<compile_context>
chip_gen: v7x
topology: tpu7x:2x2x1
jax: 0.10.0
libtpu: 0.0.40
codegen_flags: <defaults>
</compile_context>

<pallas_src>
import jax
import jax.numpy as jnp
from jax.experimental import pallas as pl
from jax.experimental.pallas import tpu as pltpu


# ------------------------------------------------------------------ helpers --

def _round_up(x, m):
    return -(-x // m) * m


def _vmem_capacity_bytes():
    """Per-generation VMEM capacity (v5e/v6e: 128 MiB, v7x: 64 MiB per TC)."""
    try:
        info = pltpu.get_tpu_info()
        cap = getattr(info, "vmem_capacity_bytes", None)
        if cap:
            return int(cap)
    except Exception:
        pass
    return 64 * 1024 * 1024  # conservative (v7x per-TensorCore)


# --------------------------------------------- fast path: VMEM-resident table --

def _make_mean_vmem_kernel(S, TB):
    inv_s = 1.0 / S

    def kernel(idx_ref, table_ref, out_ref):
        # idx_ref:   (Bp*S,) int32 in SMEM (scalar prefetch)
        # table_ref: (F, E)  VMEM-resident embedding table
        # out_ref:   (TB, E) VMEM output block
        i = pl.program_id(0)
        E = out_ref.shape[-1]
        for r in range(TB):                     # static unroll, TB = 8
            base = (i * TB + r) * S
            acc = jnp.zeros((1, E), dtype=jnp.float32)
            for s in range(S):                  # static unroll
                row = idx_ref[base + s]
                acc = acc + table_ref[pl.ds(row, 1), :].astype(jnp.float32)
            out_ref[pl.ds(r, 1), :] = (acc * inv_s).astype(out_ref.dtype)

    return kernel


def _make_seq_vmem_kernel(S, TB):
    def kernel(idx_ref, table_ref, out_ref):
        # out_ref: (TB, S, E) VMEM output block
        i = pl.program_id(0)
        for r in range(TB):
            base = (i * TB + r) * S
            for s in range(S):
                row = idx_ref[base + s]
                out_ref[r, pl.ds(s, 1), :] = table_ref[pl.ds(row, 1), :]

    return kernel


def _forward_vmem(X, table, meaning, TB, cap, padded_table_bytes):
    B, S = X.shape
    F, E = table.shape

    n_blocks = -(-B // TB)
    Bp = n_blocks * TB
    idx = X.reshape(-1)
    if Bp != B:
        idx = jnp.pad(idx, (0, (Bp - B) * S))   # padded rows read row 0; discarded

    vmem_limit = int(min(cap, max(16 << 20, 2 * padded_table_bytes + (8 << 20))))
    params = pltpu.CompilerParams(
        dimension_semantics=("parallel",),
        vmem_limit_bytes=vmem_limit)

    # Constant index_map => table is DMA'd once and stays resident in VMEM.
    table_spec = pl.BlockSpec((F, E), lambda i, idx_ref: (0, 0))

    if meaning:
        out = pl.pallas_call(
            _make_mean_vmem_kernel(S, TB),
            out_shape=jax.ShapeDtypeStruct((Bp, E), table.dtype),
            grid_spec=pltpu.PrefetchScalarGridSpec(
                num_scalar_prefetch=1,
                grid=(n_blocks,),
                in_specs=[table_spec],
                out_specs=pl.BlockSpec((TB, E), lambda i, idx_ref: (i, 0))),
            compiler_params=params,
        )(idx, table)
        return out[:B]
    else:
        out = pl.pallas_call(
            _make_seq_vmem_kernel(S, TB),
            out_shape=jax.ShapeDtypeStruct((Bp, S, E), table.dtype),
            grid_spec=pltpu.PrefetchScalarGridSpec(
                num_scalar_prefetch=1,
                grid=(n_blocks,),
                in_specs=[table_spec],
                out_specs=pl.BlockSpec((TB, S, E), lambda i, idx_ref: (i, 0, 0))),
            compiler_params=params,
        )(idx, table)
        return out[:B]


# ---------------------------------- fallback: big table stays in HBM (gather) --
# Auto-pipelined row gather via pl.Element: Pallas double-buffers row b,s+1's
# fetch behind row b,s's compute/writeback.  Not exercised at the demo shapes.

def _make_mean_hbm_kernel(S):
    inv_s = 1.0 / S

    def kernel(idx_ref, row_ref, out_ref, acc_ref):
        s = pl.program_id(1)

        @pl.when(s == 0)
        def _():
            acc_ref[...] = jnp.zeros_like(acc_ref)

        acc_ref[...] += row_ref[...].astype(jnp.float32)

        @pl.when(s == pl.num_programs(1) - 1)
        def _():
            out_ref[...] = (acc_ref[...] * inv_s).astype(out_ref.dtype)

    return kernel


def _seq_hbm_kernel(idx_ref, row_ref, out_ref):
    out_ref[...] = row_ref[...]


def _forward_hbm(X, table, meaning):
    B, S = X.shape
    F, E = table.shape
    idx = X.reshape(-1)

    params = pltpu.CompilerParams(
        dimension_semantics=("parallel", "arbitrary"))

    row_spec = pl.BlockSpec((pl.Element(1), E),
                            lambda b, s, idx_ref: (idx_ref[b * S + s], 0))

    if meaning:
        return pl.pallas_call(
            _make_mean_hbm_kernel(S),
            out_shape=jax.ShapeDtypeStruct((B, E), table.dtype),
            grid_spec=pltpu.PrefetchScalarGridSpec(
                num_scalar_prefetch=1,
                grid=(B, S),
                in_specs=[row_spec],
                out_specs=pl.BlockSpec((1, E), lambda b, s, idx_ref: (b, 0)),
                scratch_shapes=[pltpu.VMEM((1, E), jnp.float32)]),
            compiler_params=params,
        )(idx, table)
    else:
        return pl.pallas_call(
            _seq_hbm_kernel,
            out_shape=jax.ShapeDtypeStruct((B, S, E), table.dtype),
            grid_spec=pltpu.PrefetchScalarGridSpec(
                num_scalar_prefetch=1,
                grid=(B, S),
                in_specs=[row_spec],
                out_specs=pl.BlockSpec((None, 1, E),
                                       lambda b, s, idx_ref: (b, s, 0))),
            compiler_params=params,
        )(idx, table)


# ------------------------------------------------------------------ wrapper --

def embedding_unit_layer(X, table, meaning=True, table_block_rows=8):
    """Pallas implementation of EmbeddingUnitLayer.forward.

    X:     (B, S) integer indices into the embedding table.
    table: (F, E) float embedding weights.
    Returns (B, E) if meaning=True else (B, S, E).
    """
    B, S = X.shape
    F, E = table.shape
    # TODO(synk): torch.nn.Embedding raises on out-of-range indices; we clamp.
    X = jnp.clip(X.astype(jnp.int32), 0, F - 1)

    itemsize = jnp.dtype(table.dtype).itemsize
    # Padded VMEM footprint of the (8,128)-tiled table.
    padded_table_bytes = _round_up(F, 8) * _round_up(E, 128) * itemsize
    cap = _vmem_capacity_bytes()
    resident = padded_table_bytes <= cap // 4   # leave headroom for out blocks

    if resident:
        return _forward_vmem(X, table, meaning, table_block_rows, cap,
                             padded_table_bytes)
    return _forward_hbm(X, table, meaning)


# --------------------------------------------------------------------- demo --

if __name__ == "__main__":
    # Shapes consistent with the module:
    #   features_size (vocab) F = 64, embedding_size E = 32,
    #   batch B = 2, sequence length S = 8.
    B, S, F, E = 2, 8, 64, 32

    key = jax.random.PRNGKey(0)
    k_idx, k_w = jax.random.split(key)

    # Deterministic parameter init: normal_(std=0.0001), as in _init_weight_.
    table = jax.random.normal(k_w, (F, E), dtype=jnp.float32) * 1e-4

    # Integer feature indices.
    X = jax.random.randint(k_idx, (B, S), minval=0, maxval=F, dtype=jnp.int32)

    # meaning=True path (the default forward)
    out_mean = jax.block_until_ready(embedding_unit_layer(X, table, meaning=True))

    # meaning=False path
    out_full = jax.block_until_ready(embedding_unit_layer(X, table, meaning=False))

    # Pure-JAX reference.
    ref_full = jnp.take(table, X, axis=0)          # (B, S, E)
    ref_mean = jnp.mean(ref_full, axis=1)          # (B, E)

    assert out_mean.shape == (B, E)
    assert out_full.shape == (B, S, E)
    assert jnp.allclose(out_full, ref_full, atol=1e-7, rtol=1e-6)
    assert jnp.allclose(out_mean, ref_mean, atol=1e-6, rtol=1e-5)

    print("KERNEL_OK")
</pallas_src>

<mosaic_0001>
module attributes {stable_mosaic.version = 11 : i64} {
  func.func @kernel(%arg0: i32, %arg1: memref<64xi32, #tpu.memory_space<smem>>, %arg2: memref<64x32xf32, #tpu.memory_space<vmem>>, %arg3: memref<8x32xf32, #tpu.memory_space<vmem>>) attributes {dimension_semantics = [#tpu.dimension_semantics<parallel>], iteration_bounds = array<i64: 1>, scalar_prefetch = 1 : i64, scratch_operands = 0 : i64, tpu.core_type = #tpu.core_type<tc>, window_params = [{pipeline_mode = #tpu.pipeline_mode<synchronous>, transform_indices = @transform_0, window_bounds = array<i64: 64, 32>}, {transform_indices = @transform_1, window_bounds = array<i64: 8, 32>}]} {
    %c8_i32 = arith.constant 8 : i32
    %0 = arith.muli %arg0, %c8_i32 : i32
    %c0_i32 = arith.constant 0 : i32
    %1 = arith.addi %0, %c0_i32 : i32
    %c8_i32_0 = arith.constant 8 : i32
    %2 = arith.muli %1, %c8_i32_0 : i32
    %cst = arith.constant 0.000000e+00 : f32
    %3 = vector.broadcast %cst : f32 to vector<1x32xf32>
    %c0_i32_1 = arith.constant 0 : i32
    %4 = arith.addi %2, %c0_i32_1 : i32
    %5 = arith.index_cast %4 : i32 to index
    %6 = memref.load %arg1[%5] : memref<64xi32, #tpu.memory_space<smem>>
    %7 = arith.index_cast %6 : i32 to index
    %c0 = arith.constant 0 : index
    %8 = vector.load %arg2[%7, %c0] : memref<64x32xf32, #tpu.memory_space<vmem>>, vector<1x32xf32>
    %9 = arith.addf %3, %8 : vector<1x32xf32>
    %c1_i32 = arith.constant 1 : i32
    %10 = arith.addi %2, %c1_i32 : i32
    %11 = arith.index_cast %10 : i32 to index
    %12 = memref.load %arg1[%11] : memref<64xi32, #tpu.memory_space<smem>>
    %13 = arith.index_cast %12 : i32 to index
    %c0_2 = arith.constant 0 : index
    %14 = vector.load %arg2[%13, %c0_2] : memref<64x32xf32, #tpu.memory_space<vmem>>, vector<1x32xf32>
    %15 = arith.addf %9, %14 : vector<1x32xf32>
    %c2_i32 = arith.constant 2 : i32
    %16 = arith.addi %2, %c2_i32 : i32
    %17 = arith.index_cast %16 : i32 to index
    %18 = memref.load %arg1[%17] : memref<64xi32, #tpu.memory_space<smem>>
    %19 = arith.index_cast %18 : i32 to index
    %c0_3 = arith.constant 0 : index
    %20 = vector.load %arg2[%19, %c0_3] : memref<64x32xf32, #tpu.memory_space<vmem>>, vector<1x32xf32>
    %21 = arith.addf %15, %20 : vector<1x32xf32>
    %c3_i32 = arith.constant 3 : i32
    %22 = arith.addi %2, %c3_i32 : i32
    %23 = arith.index_cast %22 : i32 to index
    %24 = memref.load %arg1[%23] : memref<64xi32, #tpu.memory_space<smem>>
    %25 = arith.index_cast %24 : i32 to index
    %c0_4 = arith.constant 0 : index
    %26 = vector.load %arg2[%25, %c0_4] : memref<64x32xf32, #tpu.memory_space<vmem>>, vector<1x32xf32>
    %27 = arith.addf %21, %26 : vector<1x32xf32>
    %c4_i32 = arith.constant 4 : i32
    %28 = arith.addi %2, %c4_i32 : i32
    %29 = arith.index_cast %28 : i32 to index
    %30 = memref.load %arg1[%29] : memref<64xi32, #tpu.memory_space<smem>>
    %31 = arith.index_cast %30 : i32 to index
    %c0_5 = arith.constant 0 : index
    %32 = vector.load %arg2[%31, %c0_5] : memref<64x32xf32, #tpu.memory_space<vmem>>, vector<1x32xf32>
    %33 = arith.addf %27, %32 : vector<1x32xf32>
    %c5_i32 = arith.constant 5 : i32
    %34 = arith.addi %2, %c5_i32 : i32
    %35 = arith.index_cast %34 : i32 to index
    %36 = memref.load %arg1[%35] : memref<64xi32, #tpu.memory_space<smem>>
    %37 = arith.index_cast %36 : i32 to index
    %c0_6 = arith.constant 0 : index
    %38 = vector.load %arg2[%37, %c0_6] : memref<64x32xf32, #tpu.memory_space<vmem>>, vector<1x32xf32>
    %39 = arith.addf %33, %38 : vector<1x32xf32>
    %c6_i32 = arith.constant 6 : i32
    %40 = arith.addi %2, %c6_i32 : i32
    %41 = arith.index_cast %40 : i32 to index
    %42 = memref.load %arg1[%41] : memref<64xi32, #tpu.memory_space<smem>>
    %43 = arith.index_cast %42 : i32 to index
    %c0_7 = arith.constant 0 : index
    %44 = vector.load %arg2[%43, %c0_7] : memref<64x32xf32, #tpu.memory_space<vmem>>, vector<1x32xf32>
    %45 = arith.addf %39, %44 : vector<1x32xf32>
    %c7_i32 = arith.constant 7 : i32
    %46 = arith.addi %2, %c7_i32 : i32
    %47 = arith.index_cast %46 : i32 to index
    %48 = memref.load %arg1[%47] : memref<64xi32, #tpu.memory_space<smem>>
    %49 = arith.index_cast %48 : i32 to index
    %c0_8 = arith.constant 0 : index
    %50 = vector.load %arg2[%49, %c0_8] : memref<64x32xf32, #tpu.memory_space<vmem>>, vector<1x32xf32>
    %51 = arith.addf %45, %50 : vector<1x32xf32>
    %cst_9 = arith.constant 1.250000e-01 : f32
    %52 = vector.broadcast %cst_9 : f32 to vector<1x32xf32>
    %53 = arith.mulf %51, %52 : vector<1x32xf32>
    %c0_10 = arith.constant 0 : index
    %c0_11 = arith.constant 0 : index
    %54 = vector.load %arg3[%c0_10, %c0_11] : memref<8x32xf32, #tpu.memory_space<vmem>>, vector<1x32xf32>
    tpu.vector_store %arg3[%c0_10, %c0_11], %53 {strides = array<i32>} : memref<8x32xf32, #tpu.memory_space<vmem>>, vector<1x32xf32>,
    %c8_i32_12 = arith.constant 8 : i32
    %55 = arith.muli %arg0, %c8_i32_12 : i32
    %c1_i32_13 = arith.constant 1 : i32
    %56 = arith.addi %55, %c1_i32_13 : i32
    %c8_i32_14 = arith.constant 8 : i32
    %57 = arith.muli %56, %c8_i32_14 : i32
    %cst_15 = arith.constant 0.000000e+00 : f32
    %58 = vector.broadcast %cst_15 : f32 to vector<1x32xf32>
    %c0_i32_16 = arith.constant 0 : i32
    %59 = arith.addi %57, %c0_i32_16 : i32
    %60 = arith.index_cast %59 : i32 to index
    %61 = memref.load %arg1[%60] : memref<64xi32, #tpu.memory_space<smem>>
    %62 = arith.index_cast %61 : i32 to index
    %c0_17 = arith.constant 0 : index
    %63 = vector.load %arg2[%62, %c0_17] : memref<64x32xf32, #tpu.memory_space<vmem>>, vector<1x32xf32>
    %64 = arith.addf %58, %63 : vector<1x32xf32>
    %c1_i32_18 = arith.constant 1 : i32
    %65 = arith.addi %57, %c1_i32_18 : i32
    %66 = arith.index_cast %65 : i32 to index
    %67 = memref.load %arg1[%66] : memref<64xi32, #tpu.memory_space<smem>>
    %68 = arith.index_cast %67 : i32 to index
    %c0_19 = arith.constant 0 : index
    %69 = vector.load %arg2[%68, %c0_19] : memref<64x32xf32, #tpu.memory_space<vmem>>, vector<1x32xf32>
    %70 = arith.addf %64, %69 : vector<1x32xf32>
    %c2_i32_20 = arith.constant 2 : i32
    %71 = arith.addi %57, %c2_i32_20 : i32
    %72 = arith.index_cast %71 : i32 to index
    %73 = memref.load %arg1[%72] : memref<64xi32, #tpu.memory_space<smem>>
    %74 = arith.index_cast %73 : i32 to index
    %c0_21 = arith.constant 0 : index
    %75 = vector.load %arg2[%74, %c0_21] : memref<64x32xf32, #tpu.memory_space<vmem>>, vector<1x32xf32>
    %76 = arith.addf %70, %75 : vector<1x32xf32>
    %c3_i32_22 = arith.constant 3 : i32
    %77 = arith.addi %57, %c3_i32_22 : i32
    %78 = arith.index_cast %77 : i32 to index
    %79 = memref.load %arg1[%78] : memref<64xi32, #tpu.memory_space<smem>>
    %80 = arith.index_cast %79 : i32 to index
    %c0_23 = arith.constant 0 : index
    %81 = vector.load %arg2[%80, %c0_23] : memref<64x32xf32, #tpu.memory_space<vmem>>, vector<1x32xf32>
    %82 = arith.addf %76, %81 : vector<1x32xf32>
    %c4_i32_24 = arith.constant 4 : i32
    %83 = arith.addi %57, %c4_i32_24 : i32
    %84 = arith.index_cast %83 : i32 to index
    %85 = memref.load %arg1[%84] : memref<64xi32, #tpu.memory_space<smem>>
    %86 = arith.index_cast %85 : i32 to index
    %c0_25 = arith.constant 0 : index
    %87 = vector.load %arg2[%86, %c0_25] : memref<64x32xf32, #tpu.memory_space<vmem>>, vector<1x32xf32>
    %88 = arith.addf %82, %87 : vector<1x32xf32>
    %c5_i32_26 = arith.constant 5 : i32
    %89 = arith.addi %57, %c5_i32_26 : i32
    %90 = arith.index_cast %89 : i32 to index
    %91 = memref.load %arg1[%90] : memref<64xi32, #tpu.memory_space<smem>>
    %92 = arith.index_cast %91 : i32 to index
    %c0_27 = arith.constant 0 : index
    %93 = vector.load %arg2[%92, %c0_27] : memref<64x32xf32, #tpu.memory_space<vmem>>, vector<1x32xf32>
    %94 = arith.addf %88, %93 : vector<1x32xf32>
    %c6_i32_28 = arith.constant 6 : i32
    %95 = arith.addi %57, %c6_i32_28 : i32
    %96 = arith.index_cast %95 : i32 to index
    %97 = memref.load %arg1[%96] : memref<64xi32, #tpu.memory_space<smem>>
    %98 = arith.index_cast %97 : i32 to index
    %c0_29 = arith.constant 0 : index
    %99 = vector.load %arg2[%98, %c0_29] : memref<64x32xf32, #tpu.memory_space<vmem>>, vector<1x32xf32>
    %100 = arith.addf %94, %99 : vector<1x32xf32>
    %c7_i32_30 = arith.constant 7 : i32
    %101 = arith.addi %57, %c7_i32_30 : i32
    %102 = arith.index_cast %101 : i32 to index
    %103 = memref.load %arg1[%102] : memref<64xi32, #tpu.memory_space<smem>>
    %104 = arith.index_cast %103 : i32 to index
    %c0_31 = arith.constant 0 : index
    %105 = vector.load %arg2[%104, %c0_31] : memref<64x32xf32, #tpu.memory_space<vmem>>, vector<1x32xf32>
    %106 = arith.addf %100, %105 : vector<1x32xf32>
    %cst_32 = arith.constant 1.250000e-01 : f32
    %107 = vector.broadcast %cst_32 : f32 to vector<1x32xf32>
    %108 = arith.mulf %106, %107 : vector<1x32xf32>
    %c1 = arith.constant 1 : index
    %c0_33 = arith.constant 0 : index
    %109 = vector.load %arg3[%c1, %c0_33] : memref<8x32xf32, #tpu.memory_space<vmem>>, vector<1x32xf32>
    tpu.vector_store %arg3[%c1, %c0_33], %108 {strides = array<i32>} : memref<8x32xf32, #tpu.memory_space<vmem>>, vector<1x32xf32>,
    %c8_i32_34 = arith.constant 8 : i32
    %110 = arith.muli %arg0, %c8_i32_34 : i32
    %c2_i32_35 = arith.constant 2 : i32
    %111 = arith.addi %110, %c2_i32_35 : i32
    %c8_i32_36 = arith.constant 8 : i32
    %112 = arith.muli %111, %c8_i32_36 : i32
    %cst_37 = arith.constant 0.000000e+00 : f32
    %113 = vector.broadcast %cst_37 : f32 to vector<1x32xf32>
    %c0_i32_38 = arith.constant 0 : i32
    %114 = arith.addi %112, %c0_i32_38 : i32
    %115 = arith.index_cast %114 : i32 to index
    %116 = memref.load %arg1[%115] : memref<64xi32, #tpu.memory_space<smem>>
    %117 = arith.index_cast %116 : i32 to index
    %c0_39 = arith.constant 0 : index
    %118 = vector.load %arg2[%117, %c0_39] : memref<64x32xf32, #tpu.memory_space<vmem>>, vector<1x32xf32>
    %119 = arith.addf %113, %118 : vector<1x32xf32>
    %c1_i32_40 = arith.constant 1 : i32
    %120 = arith.addi %112, %c1_i32_40 : i32
    %121 = arith.index_cast %120 : i32 to index
    %122 = memref.load %arg1[%121] : memref<64xi32, #tpu.memory_space<smem>>
    %123 = arith.index_cast %122 : i32 to index
    %c0_41 = arith.constant 0 : index
    %124 = vector.load %arg2[%123, %c0_41] : memref<64x32xf32, #tpu.memory_space<vmem>>, vector<1x32xf32>
    %125 = arith.addf %119, %124 : vector<1x32xf32>
    %c2_i32_42 = arith.constant 2 : i32
    %126 = arith.addi %112, %c2_i32_42 : i32
    %127 = arith.index_cast %126 : i32 to index
    %128 = memref.load %arg1[%127] : memref<64xi32, #tpu.memory_space<smem>>
    %129 = arith.index_cast %128 : i32 to index
    %c0_43 = arith.constant 0 : index
    %130 = vector.load %arg2[%129, %c0_43] : memref<64x32xf32, #tpu.memory_space<vmem>>, vector<1x32xf32>
    %131 = arith.addf %125, %130 : vector<1x32xf32>
    %c3_i32_44 = arith.constant 3 : i32
    %132 = arith.addi %112, %c3_i32_44 : i32
    %133 = arith.index_cast %132 : i32 to index
    %134 = memref.load %arg1[%133] : memref<64xi32, #tpu.memory_space<smem>>
    %135 = arith.index_cast %134 : i32 to index
    %c0_45 = arith.constant 0 : index
    %136 = vector.load %arg2[%135, %c0_45] : memref<64x32xf32, #tpu.memory_space<vmem>>, vector<1x32xf32>
    %137 = arith.addf %131, %136 : vector<1x32xf32>
    %c4_i32_46 = arith.constant 4 : i32
    %138 = arith.addi %112, %c4_i32_46 : i32
    %139 = arith.index_cast %138 : i32 to index
    %140 = memref.load %arg1[%139] : memref<64xi32, #tpu.memory_space<smem>>
    %141 = arith.index_cast %140 : i32 to index
    %c0_47 = arith.constant 0 : index
    %142 = vector.load %arg2[%141, %c0_47] : memref<64x32xf32, #tpu.memory_space<vmem>>, vector<1x32xf32>
    %143 = arith.addf %137, %142 : vector<1x32xf32>
    %c5_i32_48 = arith.constant 5 : i32
    %144 = arith.addi %112, %c5_i32_48 : i32
    %145 = arith.index_cast %144 : i32 to index
    %146 = memref.load %arg1[%145] : memref<64xi32, #tpu.memory_space<smem>>
    %147 = arith.index_cast %146 : i32 to index
    %c0_49 = arith.constant 0 : index
    %148 = vector.load %arg2[%147, %c0_49] : memref<64x32xf32, #tpu.memory_space<vmem>>, vector<1x32xf32>
    %149 = arith.addf %143, %148 : vector<1x32xf32>
    %c6_i32_50 = arith.constant 6 : i32
    %150 = arith.addi %112, %c6_i32_50 : i32
    %151 = arith.index_cast %150 : i32 to index
    %152 = memref.load %arg1[%151] : memref<64xi32, #tpu.memory_space<smem>>
    %153 = arith.index_cast %152 : i32 to index
    %c0_51 = arith.constant 0 : index
    %154 = vector.load %arg2[%153, %c0_51] : memref<64x32xf32, #tpu.memory_space<vmem>>, vector<1x32xf32>
    %155 = arith.addf %149, %154 : vector<1x32xf32>
    %c7_i32_52 = arith.constant 7 : i32
    %156 = arith.addi %112, %c7_i32_52 : i32
    %157 = arith.index_cast %156 : i32 to index
    %158 = memref.load %arg1[%157] : memref<64xi32, #tpu.memory_space<smem>>
    %159 = arith.index_cast %158 : i32 to index
    %c0_53 = arith.constant 0 : index
    %160 = vector.load %arg2[%159, %c0_53] : memref<64x32xf32, #tpu.memory_space<vmem>>, vector<1x32xf32>
    %161 = arith.addf %155, %160 : vector<1x32xf32>
    %cst_54 = arith.constant 1.250000e-01 : f32
    %162 = vector.broadcast %cst_54 : f32 to vector<1x32xf32>
    %163 = arith.mulf %161, %162 : vector<1x32xf32>
    %c2 = arith.constant 2 : index
    %c0_55 = arith.constant 0 : index
    %164 = vector.load %arg3[%c2, %c0_55] : memref<8x32xf32, #tpu.memory_space<vmem>>, vector<1x32xf32>
    tpu.vector_store %arg3[%c2, %c0_55], %163 {strides = array<i32>} : memref<8x32xf32, #tpu.memory_space<vmem>>, vector<1x32xf32>,
    %c8_i32_56 = arith.constant 8 : i32
    %165 = arith.muli %arg0, %c8_i32_56 : i32
    %c3_i32_57 = arith.constant 3 : i32
    %166 = arith.addi %165, %c3_i32_57 : i32
    %c8_i32_58 = arith.constant 8 : i32
    %167 = arith.muli %166, %c8_i32_58 : i32
    %cst_59 = arith.constant 0.000000e+00 : f32
    %168 = vector.broadcast %cst_59 : f32 to vector<1x32xf32>
    %c0_i32_60 = arith.constant 0 : i32
    %169 = arith.addi %167, %c0_i32_60 : i32
    %170 = arith.index_cast %169 : i32 to index
    %171 = memref.load %arg1[%170] : memref<64xi32, #tpu.memory_space<smem>>
    %172 = arith.index_cast %171 : i32 to index
    %c0_61 = arith.constant 0 : index
    %173 = vector.load %arg2[%172, %c0_61] : memref<64x32xf32, #tpu.memory_space<vmem>>, vector<1x32xf32>
    %174 = arith.addf %168, %173 : vector<1x32xf32>
    %c1_i32_62 = arith.constant 1 : i32
    %175 = arith.addi %167, %c1_i32_62 : i32
    %176 = arith.index_cast %175 : i32 to index
    %177 = memref.load %arg1[%176] : memref<64xi32, #tpu.memory_space<smem>>
    %178 = arith.index_cast %177 : i32 to index
    %c0_63 = arith.constant 0 : index
    %179 = vector.load %arg2[%178, %c0_63] : memref<64x32xf32, #tpu.memory_space<vmem>>, vector<1x32xf32>
    %180 = arith.addf %174, %179 : vector<1x32xf32>
    %c2_i32_64 = arith.constant 2 : i32
    %181 = arith.addi %167, %c2_i32_64 : i32
    %182 = arith.index_cast %181 : i32 to index
    %183 = memref.load %arg1[%182] : memref<64xi32, #tpu.memory_space<smem>>
    %184 = arith.index_cast %183 : i32 to index
    %c0_65 = arith.constant 0 : index
    %185 = vector.load %arg2[%184, %c0_65] : memref<64x32xf32, #tpu.memory_space<vmem>>, vector<1x32xf32>
    %186 = arith.addf %180, %185 : vector<1x32xf32>
    %c3_i32_66 = arith.constant 3 : i32
    %187 = arith.addi %167, %c3_i32_66 : i32
    %188 = arith.index_cast %187 : i32 to index
    %189 = memref.load %arg1[%188] : memref<64xi32, #tpu.memory_space<smem>>
    %190 = arith.index_cast %189 : i32 to index
    %c0_67 = arith.constant 0 : index
    %191 = vector.load %arg2[%190, %c0_67] : memref<64x32xf32, #tpu.memory_space<vmem>>, vector<1x32xf32>
    %192 = arith.addf %186, %191 : vector<1x32xf32>
    %c4_i32_68 = arith.constant 4 : i32
    %193 = arith.addi %167, %c4_i32_68 : i32
    %194 = arith.index_cast %193 : i32 to index
    %195 = memref.load %arg1[%194] : memref<64xi32, #tpu.memory_space<smem>>
    %196 = arith.index_cast %195 : i32 to index
    %c0_69 = arith.constant 0 : index
    %197 = vector.load %arg2[%196, %c0_69] : memref<64x32xf32, #tpu.memory_space<vmem>>, vector<1x32xf32>
    %198 = arith.addf %192, %197 : vector<1x32xf32>
    %c5_i32_70 = arith.constant 5 : i32
    %199 = arith.addi %167, %c5_i32_70 : i32
    %200 = arith.index_cast %199 : i32 to index
    %201 = memref.load %arg1[%200] : memref<64xi32, #tpu.memory_space<smem>>
    %202 = arith.index_cast %201 : i32 to index
    %c0_71 = arith.constant 0 : index
    %203 = vector.load %arg2[%202, %c0_71] : memref<64x32xf32, #tpu.memory_space<vmem>>, vector<1x32xf32>
    %204 = arith.addf %198, %203 : vector<1x32xf32>
    %c6_i32_72 = arith.constant 6 : i32
    %205 = arith.addi %167, %c6_i32_72 : i32
    %206 = arith.index_cast %205 : i32 to index
    %207 = memref.load %arg1[%206] : memref<64xi32, #tpu.memory_space<smem>>
    %208 = arith.index_cast %207 : i32 to index
    %c0_73 = arith.constant 0 : index
    %209 = vector.load %arg2[%208, %c0_73] : memref<64x32xf32, #tpu.memory_space<vmem>>, vector<1x32xf32>
    %210 = arith.addf %204, %209 : vector<1x32xf32>
    %c7_i32_74 = arith.constant 7 : i32
    %211 = arith.addi %167, %c7_i32_74 : i32
    %212 = arith.index_cast %211 : i32 to index
    %213 = memref.load %arg1[%212] : memref<64xi32, #tpu.memory_space<smem>>
    %214 = arith.index_cast %213 : i32 to index
    %c0_75 = arith.constant 0 : index
    %215 = vector.load %arg2[%214, %c0_75] : memref<64x32xf32, #tpu.memory_space<vmem>>, vector<1x32xf32>
    %216 = arith.addf %210, %215 : vector<1x32xf32>
    %cst_76 = arith.constant 1.250000e-01 : f32
    %217 = vector.broadcast %cst_76 : f32 to vector<1x32xf32>
    %218 = arith.mulf %216, %217 : vector<1x32xf32>
    %c3 = arith.constant 3 : index
    %c0_77 = arith.constant 0 : index
    %219 = vector.load %arg3[%c3, %c0_77] : memref<8x32xf32, #tpu.memory_space<vmem>>, vector<1x32xf32>
    tpu.vector_store %arg3[%c3, %c0_77], %218 {strides = array<i32>} : memref<8x32xf32, #tpu.memory_space<vmem>>, vector<1x32xf32>,
    %c8_i32_78 = arith.constant 8 : i32
    %220 = arith.muli %arg0, %c8_i32_78 : i32
    %c4_i32_79 = arith.constant 4 : i32
    %221 = arith.addi %220, %c4_i32_79 : i32
    %c8_i32_80 = arith.constant 8 : i32
    %222 = arith.muli %221, %c8_i32_80 : i32
    %cst_81 = arith.constant 0.000000e+00 : f32
    %223 = vector.broadcast %cst_81 : f32 to vector<1x32xf32>
    %c0_i32_82 = arith.constant 0 : i32
    %224 = arith.addi %222, %c0_i32_82 : i32
    %225 = arith.index_cast %224 : i32 to index
    %226 = memref.load %arg1[%225] : memref<64xi32, #tpu.memory_space<smem>>
    %227 = arith.index_cast %226 : i32 to index
    %c0_83 = arith.constant 0 : index
    %228 = vector.load %arg2[%227, %c0_83] : memref<64x32xf32, #tpu.memory_space<vmem>>, vector<1x32xf32>
    %229 = arith.addf %223, %228 : vector<1x32xf32>
    %c1_i32_84 = arith.constant 1 : i32
    %230 = arith.addi %222, %c1_i32_84 : i32
    %231 = arith.index_cast %230 : i32 to index
    %232 = memref.load %arg1[%231] : memref<64xi32, #tpu.memory_space<smem>>
    %233 = arith.index_cast %232 : i32 to index
    %c0_85 = arith.constant 0 : index
    %234 = vector.load %arg2[%233, %c0_85] : memref<64x32xf32, #tpu.memory_space<vmem>>, vector<1x32xf32>
    %235 = arith.addf %229, %234 : vector<1x32xf32>
    %c2_i32_86 = arith.constant 2 : i32
    %236 = arith.addi %222, %c2_i32_86 : i32
    %237 = arith.index_cast %236 : i32 to index
    %238 = memref.load %arg1[%237] : memref<64xi32, #tpu.memory_space<smem>>
    %239 = arith.index_cast %238 : i32 to index
    %c0_87 = arith.constant 0 : index
    %240 = vector.load %arg2[%239, %c0_87] : memref<64x32xf32, #tpu.memory_space<vmem>>, vector<1x32xf32>
    %241 = arith.addf %235, %240 : vector<1x32xf32>
    %c3_i32_88 = arith.constant 3 : i32
    %242 = arith.addi %222, %c3_i32_88 : i32
    %243 = arith.index_cast %242 : i32 to index
    %244 = memref.load %arg1[%243] : memref<64xi32, #tpu.memory_space<smem>>
    %245 = arith.index_cast %244 : i32 to index
    %c0_89 = arith.constant 0 : index
    %246 = vector.load %arg2[%245, %c0_89] : memref<64x32xf32, #tpu.memory_space<vmem>>, vector<1x32xf32>
    %247 = arith.addf %241, %246 : vector<1x32xf32>
    %c4_i32_90 = arith.constant 4 : i32
    %248 = arith.addi %222, %c4_i32_90 : i32
    %249 = arith.index_cast %248 : i32 to index
    %250 = memref.load %arg1[%249] : memref<64xi32, #tpu.memory_space<smem>>
    %251 = arith.index_cast %250 : i32 to index
    %c0_91 = arith.constant 0 : index
    %252 = vector.load %arg2[%251, %c0_91] : memref<64x32xf32, #tpu.memory_space<vmem>>, vector<1x32xf32>
    %253 = arith.addf %247, %252 : vector<1x32xf32>
    %c5_i32_92 = arith.constant 5 : i32
    %254 = arith.addi %222, %c5_i32_92 : i32
    %255 = arith.index_cast %254 : i32 to index
    %256 = memref.load %arg1[%255] : memref<64xi32, #tpu.memory_space<smem>>
    %257 = arith.index_cast %256 : i32 to index
    %c0_93 = arith.constant 0 : index
    %258 = vector.load %arg2[%257, %c0_93] : memref<64x32xf32, #tpu.memory_space<vmem>>, vector<1x32xf32>
    %259 = arith.addf %253, %258 : vector<1x32xf32>
    %c6_i32_94 = arith.constant 6 : i32
    %260 = arith.addi %222, %c6_i32_94 : i32
    %261 = arith.index_cast %260 : i32 to index
    %262 = memref.load %arg1[%261] : memref<64xi32, #tpu.memory_space<smem>>
    %263 = arith.index_cast %262 : i32 to index
    %c0_95 = arith.constant 0 : index
    %264 = vector.load %arg2[%263, %c0_95] : memref<64x32xf32, #tpu.memory_space<vmem>>, vector<1x32xf32>
    %265 = arith.addf %259, %264 : vector<1x32xf32>
    %c7_i32_96 = arith.constant 7 : i32
    %266 = arith.addi %222, %c7_i32_96 : i32
    %267 = arith.index_cast %266 : i32 to index
    %268 = memref.load %arg1[%267] : memref<64xi32, #tpu.memory_space<smem>>
    %269 = arith.index_cast %268 : i32 to index
    %c0_97 = arith.constant 0 : index
    %270 = vector.load %arg2[%269, %c0_97] : memref<64x32xf32, #tpu.memory_space<vmem>>, vector<1x32xf32>
    %271 = arith.addf %265, %270 : vector<1x32xf32>
    %cst_98 = arith.constant 1.250000e-01 : f32
    %272 = vector.broadcast %cst_98 : f32 to vector<1x32xf32>
    %273 = arith.mulf %271, %272 : vector<1x32xf32>
    %c4 = arith.constant 4 : index
    %c0_99 = arith.constant 0 : index
    %274 = vector.load %arg3[%c4, %c0_99] : memref<8x32xf32, #tpu.memory_space<vmem>>, vector<1x32xf32>
    tpu.vector_store %arg3[%c4, %c0_99], %273 {strides = array<i32>} : memref<8x32xf32, #tpu.memory_space<vmem>>, vector<1x32xf32>,
    %c8_i32_100 = arith.constant 8 : i32
    %275 = arith.muli %arg0, %c8_i32_100 : i32
    %c5_i32_101 = arith.constant 5 : i32
    %276 = arith.addi %275, %c5_i32_101 : i32
    %c8_i32_102 = arith.constant 8 : i32
    %277 = arith.muli %276, %c8_i32_102 : i32
    %cst_103 = arith.constant 0.000000e+00 : f32
    %278 = vector.broadcast %cst_103 : f32 to vector<1x32xf32>
    %c0_i32_104 = arith.constant 0 : i32
    %279 = arith.addi %277, %c0_i32_104 : i32
    %280 = arith.index_cast %279 : i32 to index
    %281 = memref.load %arg1[%280] : memref<64xi32, #tpu.memory_space<smem>>
    %282 = arith.index_cast %281 : i32 to index
    %c0_105 = arith.constant 0 : index
    %283 = vector.load %arg2[%282, %c0_105] : memref<64x32xf32, #tpu.memory_space<vmem>>, vector<1x32xf32>
    %284 = arith.addf %278, %283 : vector<1x32xf32>
    %c1_i32_106 = arith.constant 1 : i32
    %285 = arith.addi %277, %c1_i32_106 : i32
    %286 = arith.index_cast %285 : i32 to index
    %287 = memref.load %arg1[%286] : memref<64xi32, #tpu.memory_space<smem>>
    %288 = arith.index_cast %287 : i32 to index
    %c0_107 = arith.constant 0 : index
    %289 = vector.load %arg2[%288, %c0_107] : memref<64x32xf32, #tpu.memory_space<vmem>>, vector<1x32xf32>
    %290 = arith.addf %284, %289 : vector<1x32xf32>
    %c2_i32_108 = arith.constant 2 : i32
    %291 = arith.addi %277, %c2_i32_108 : i32
    %292 = arith.index_cast %291 : i32 to index
    %293 = memref.load %arg1[%292] : memref<64xi32, #tpu.memory_space<smem>>
    %294 = arith.index_cast %293 : i32 to index
    %c0_109 = arith.constant 0 : index
    %295 = vector.load %arg2[%294, %c0_109] : memref<64x32xf32, #tpu.memory_space<vmem>>, vector<1x32xf32>
    %296 = arith.addf %290, %295 : vector<1x32xf32>
    %c3_i32_110 = arith.constant 3 : i32
    %297 = arith.addi %277, %c3_i32_110 : i32
    %298 = arith.index_cast %297 : i32 to index
    %299 = memref.load %arg1[%298] : memref<64xi32, #tpu.memory_space<smem>>
    %300 = arith.index_cast %299 : i32 to index
    %c0_111 = arith.constant 0 : index
    %301 = vector.load %arg2[%300, %c0_111] : memref<64x32xf32, #tpu.memory_space<vmem>>, vector<1x32xf32>
    %302 = arith.addf %296, %301 : vector<1x32xf32>
    %c4_i32_112 = arith.constant 4 : i32
    %303 = arith.addi %277, %c4_i32_112 : i32
    %304 = arith.index_cast %303 : i32 to index
    %305 = memref.load %arg1[%304] : memref<64xi32, #tpu.memory_space<smem>>
    %306 = arith.index_cast %305 : i32 to index
    %c0_113 = arith.constant 0 : index
    %307 = vector.load %arg2[%306, %c0_113] : memref<64x32xf32, #tpu.memory_space<vmem>>, vector<1x32xf32>
    %308 = arith.addf %302, %307 : vector<1x32xf32>
    %c5_i32_114 = arith.constant 5 : i32
    %309 = arith.addi %277, %c5_i32_114 : i32
    %310 = arith.index_cast %309 : i32 to index
    %311 = memref.load %arg1[%310] : memref<64xi32, #tpu.memory_space<smem>>
    %312 = arith.index_cast %311 : i32 to index
    %c0_115 = arith.constant 0 : index
    %313 = vector.load %arg2[%312, %c0_115] : memref<64x32xf32, #tpu.memory_space<vmem>>, vector<1x32xf32>
    %314 = arith.addf %308, %313 : vector<1x32xf32>
    %c6_i32_116 = arith.constant 6 : i32
    %315 = arith.addi %277, %c6_i32_116 : i32
    %316 = arith.index_cast %315 : i32 to index
    %317 = memref.load %arg1[%316] : memref<64xi32, #tpu.memory_space<smem>>
    %318 = arith.index_cast %317 : i32 to index
    %c0_117 = arith.constant 0 : index
    %319 = vector.load %arg2[%318, %c0_117] : memref<64x32xf32, #tpu.memory_space<vmem>>, vector<1x32xf32>
    %320 = arith.addf %314, %319 : vector<1x32xf32>
    %c7_i32_118 = arith.constant 7 : i32
    %321 = arith.addi %277, %c7_i32_118 : i32
    %322 = arith.index_cast %321 : i32 to index
    %323 = memref.load %arg1[%322] : memref<64xi32, #tpu.memory_space<smem>>
    %324 = arith.index_cast %323 : i32 to index
    %c0_119 = arith.constant 0 : index
    %325 = vector.load %arg2[%324, %c0_119] : memref<64x32xf32, #tpu.memory_space<vmem>>, vector<1x32xf32>
    %326 = arith.addf %320, %325 : vector<1x32xf32>
    %cst_120 = arith.constant 1.250000e-01 : f32
    %327 = vector.broadcast %cst_120 : f32 to vector<1x32xf32>
    %328 = arith.mulf %326, %327 : vector<1x32xf32>
    %c5 = arith.constant 5 : index
    %c0_121 = arith.constant 0 : index
    %329 = vector.load %arg3[%c5, %c0_121] : memref<8x32xf32, #tpu.memory_space<vmem>>, vector<1x32xf32>
    tpu.vector_store %arg3[%c5, %c0_121], %328 {strides = array<i32>} : memref<8x32xf32, #tpu.memory_space<vmem>>, vector<1x32xf32>,
    %c8_i32_122 = arith.constant 8 : i32
    %330 = arith.muli %arg0, %c8_i32_122 : i32
    %c6_i32_123 = arith.constant 6 : i32
    %331 = arith.addi %330, %c6_i32_123 : i32
    %c8_i32_124 = arith.constant 8 : i32
    %332 = arith.muli %331, %c8_i32_124 : i32
    %cst_125 = arith.constant 0.000000e+00 : f32
    %333 = vector.broadcast %cst_125 : f32 to vector<1x32xf32>
    %c0_i32_126 = arith.constant 0 : i32
    %334 = arith.addi %332, %c0_i32_126 : i32
    %335 = arith.index_cast %334 : i32 to index
    %336 = memref.load %arg1[%335] : memref<64xi32, #tpu.memory_space<smem>>
    %337 = arith.index_cast %336 : i32 to index
    %c0_127 = arith.constant 0 : index
    %338 = vector.load %arg2[%337, %c0_127] : memref<64x32xf32, #tpu.memory_space<vmem>>, vector<1x32xf32>
    %339 = arith.addf %333, %338 : vector<1x32xf32>
    %c1_i32_128 = arith.constant 1 : i32
    %340 = arith.addi %332, %c1_i32_128 : i32
    %341 = arith.index_cast %340 : i32 to index
    %342 = memref.load %arg1[%341] : memref<64xi32, #tpu.memory_space<smem>>
    %343 = arith.index_cast %342 : i32 to index
    %c0_129 = arith.constant 0 : index
    %344 = vector.load %arg2[%343, %c0_129] : memref<64x32xf32, #tpu.memory_space<vmem>>, vector<1x32xf32>
    %345 = arith.addf %339, %344 : vector<1x32xf32>
    %c2_i32_130 = arith.constant 2 : i32
    %346 = arith.addi %332, %c2_i32_130 : i32
    %347 = arith.index_cast %346 : i32 to index
    %348 = memref.load %arg1[%347] : memref<64xi32, #tpu.memory_space<smem>>
    %349 = arith.index_cast %348 : i32 to index
    %c0_131 = arith.constant 0 : index
    %350 = vector.load %arg2[%349, %c0_131] : memref<64x32xf32, #tpu.memory_space<vmem>>, vector<1x32xf32>
    %351 = arith.addf %345, %350 : vector<1x32xf32>
    %c3_i32_132 = arith.constant 3 : i32
    %352 = arith.addi %332, %c3_i32_132 : i32
    %353 = arith.index_cast %352 : i32 to index
    %354 = memref.load %arg1[%353] : memref<64xi32, #tpu.memory_space<smem>>
    %355 = arith.index_cast %354 : i32 to index
    %c0_133 = arith.constant 0 : index
    %356 = vector.load %arg2[%355, %c0_133] : memref<64x32xf32, #tpu.memory_space<vmem>>, vector<1x32xf32>
    %357 = arith.addf %351, %356 : vector<1x32xf32>
    %c4_i32_134 = arith.constant 4 : i32
    %358 = arith.addi %332, %c4_i32_134 : i32
    %359 = arith.index_cast %358 : i32 to index
    %360 = memref.load %arg1[%359] : memref<64xi32, #tpu.memory_space<smem>>
    %361 = arith.index_cast %360 : i32 to index
    %c0_135 = arith.constant 0 : index
    %362 = vector.load %arg2[%361, %c0_135] : memref<64x32xf32, #tpu.memory_space<vmem>>, vector<1x32xf32>
    %363 = arith.addf %357, %362 : vector<1x32xf32>
    %c5_i32_136 = arith.constant 5 : i32
    %364 = arith.addi %332, %c5_i32_136 : i32
    %365 = arith.index_cast %364 : i32 to index
    %366 = memref.load %arg1[%365] : memref<64xi32, #tpu.memory_space<smem>>
    %367 = arith.index_cast %366 : i32 to index
    %c0_137 = arith.constant 0 : index
    %368 = vector.load %arg2[%367, %c0_137] : memref<64x32xf32, #tpu.memory_space<vmem>>, vector<1x32xf32>
    %369 = arith.addf %363, %368 : vector<1x32xf32>
    %c6_i32_138 = arith.constant 6 : i32
    %370 = arith.addi %332, %c6_i32_138 : i32
    %371 = arith.index_cast %370 : i32 to index
    %372 = memref.load %arg1[%371] : memref<64xi32, #tpu.memory_space<smem>>
    %373 = arith.index_cast %372 : i32 to index
    %c0_139 = arith.constant 0 : index
    %374 = vector.load %arg2[%373, %c0_139] : memref<64x32xf32, #tpu.memory_space<vmem>>, vector<1x32xf32>
    %375 = arith.addf %369, %374 : vector<1x32xf32>
    %c7_i32_140 = arith.constant 7 : i32
    %376 = arith.addi %332, %c7_i32_140 : i32
    %377 = arith.index_cast %376 : i32 to index
    %378 = memref.load %arg1[%377] : memref<64xi32, #tpu.memory_space<smem>>
    %379 = arith.index_cast %378 : i32 to index
    %c0_141 = arith.constant 0 : index
    %380 = vector.load %arg2[%379, %c0_141] : memref<64x32xf32, #tpu.memory_space<vmem>>, vector<1x32xf32>
    %381 = arith.addf %375, %380 : vector<1x32xf32>
    %cst_142 = arith.constant 1.250000e-01 : f32
    %382 = vector.broadcast %cst_142 : f32 to vector<1x32xf32>
    %383 = arith.mulf %381, %382 : vector<1x32xf32>
    %c6 = arith.constant 6 : index
    %c0_143 = arith.constant 0 : index
    %384 = vector.load %arg3[%c6, %c0_143] : memref<8x32xf32, #tpu.memory_space<vmem>>, vector<1x32xf32>
    tpu.vector_store %arg3[%c6, %c0_143], %383 {strides = array<i32>} : memref<8x32xf32, #tpu.memory_space<vmem>>, vector<1x32xf32>,
    %c8_i32_144 = arith.constant 8 : i32
    %385 = arith.muli %arg0, %c8_i32_144 : i32
    %c7_i32_145 = arith.constant 7 : i32
    %386 = arith.addi %385, %c7_i32_145 : i32
    %c8_i32_146 = arith.constant 8 : i32
    %387 = arith.muli %386, %c8_i32_146 : i32
    %cst_147 = arith.constant 0.000000e+00 : f32
    %388 = vector.broadcast %cst_147 : f32 to vector<1x32xf32>
    %c0_i32_148 = arith.constant 0 : i32
    %389 = arith.addi %387, %c0_i32_148 : i32
    %390 = arith.index_cast %389 : i32 to index
    %391 = memref.load %arg1[%390] : memref<64xi32, #tpu.memory_space<smem>>
    %392 = arith.index_cast %391 : i32 to index
    %c0_149 = arith.constant 0 : index
    %393 = vector.load %arg2[%392, %c0_149] : memref<64x32xf32, #tpu.memory_space<vmem>>, vector<1x32xf32>
    %394 = arith.addf %388, %393 : vector<1x32xf32>
    %c1_i32_150 = arith.constant 1 : i32
    %395 = arith.addi %387, %c1_i32_150 : i32
    %396 = arith.index_cast %395 : i32 to index
    %397 = memref.load %arg1[%396] : memref<64xi32, #tpu.memory_space<smem>>
    %398 = arith.index_cast %397 : i32 to index
    %c0_151 = arith.constant 0 : index
    %399 = vector.load %arg2[%398, %c0_151] : memref<64x32xf32, #tpu.memory_space<vmem>>, vector<1x32xf32>
    %400 = arith.addf %394, %399 : vector<1x32xf32>
    %c2_i32_152 = arith.constant 2 : i32
    %401 = arith.addi %387, %c2_i32_152 : i32
    %402 = arith.index_cast %401 : i32 to index
    %403 = memref.load %arg1[%402] : memref<64xi32, #tpu.memory_space<smem>>
    %404 = arith.index_cast %403 : i32 to index
    %c0_153 = arith.constant 0 : index
    %405 = vector.load %arg2[%404, %c0_153] : memref<64x32xf32, #tpu.memory_space<vmem>>, vector<1x32xf32>
    %406 = arith.addf %400, %405 : vector<1x32xf32>
    %c3_i32_154 = arith.constant 3 : i32
    %407 = arith.addi %387, %c3_i32_154 : i32
    %408 = arith.index_cast %407 : i32 to index
    %409 = memref.load %arg1[%408] : memref<64xi32, #tpu.memory_space<smem>>
    %410 = arith.index_cast %409 : i32 to index
    %c0_155 = arith.constant 0 : index
    %411 = vector.load %arg2[%410, %c0_155] : memref<64x32xf32, #tpu.memory_space<vmem>>, vector<1x32xf32>
    %412 = arith.addf %406, %411 : vector<1x32xf32>
    %c4_i32_156 = arith.constant 4 : i32
    %413 = arith.addi %387, %c4_i32_156 : i32
    %414 = arith.index_cast %413 : i32 to index
    %415 = memref.load %arg1[%414] : memref<64xi32, #tpu.memory_space<smem>>
    %416 = arith.index_cast %415 : i32 to index
    %c0_157 = arith.constant 0 : index
    %417 = vector.load %arg2[%416, %c0_157] : memref<64x32xf32, #tpu.memory_space<vmem>>, vector<1x32xf32>
    %418 = arith.addf %412, %417 : vector<1x32xf32>
    %c5_i32_158 = arith.constant 5 : i32
    %419 = arith.addi %387, %c5_i32_158 : i32
    %420 = arith.index_cast %419 : i32 to index
    %421 = memref.load %arg1[%420] : memref<64xi32, #tpu.memory_space<smem>>
    %422 = arith.index_cast %421 : i32 to index
    %c0_159 = arith.constant 0 : index
    %423 = vector.load %arg2[%422, %c0_159] : memref<64x32xf32, #tpu.memory_space<vmem>>, vector<1x32xf32>
    %424 = arith.addf %418, %423 : vector<1x32xf32>
    %c6_i32_160 = arith.constant 6 : i32
    %425 = arith.addi %387, %c6_i32_160 : i32
    %426 = arith.index_cast %425 : i32 to index
    %427 = memref.load %arg1[%426] : memref<64xi32, #tpu.memory_space<smem>>
    %428 = arith.index_cast %427 : i32 to index
    %c0_161 = arith.constant 0 : index
    %429 = vector.load %arg2[%428, %c0_161] : memref<64x32xf32, #tpu.memory_space<vmem>>, vector<1x32xf32>
    %430 = arith.addf %424, %429 : vector<1x32xf32>
    %c7_i32_162 = arith.constant 7 : i32
    %431 = arith.addi %387, %c7_i32_162 : i32
    %432 = arith.index_cast %431 : i32 to index
    %433 = memref.load %arg1[%432] : memref<64xi32, #tpu.memory_space<smem>>
    %434 = arith.index_cast %433 : i32 to index
    %c0_163 = arith.constant 0 : index
    %435 = vector.load %arg2[%434, %c0_163] : memref<64x32xf32, #tpu.memory_space<vmem>>, vector<1x32xf32>
    %436 = arith.addf %430, %435 : vector<1x32xf32>
    %cst_164 = arith.constant 1.250000e-01 : f32
    %437 = vector.broadcast %cst_164 : f32 to vector<1x32xf32>
    %438 = arith.mulf %436, %437 : vector<1x32xf32>
    %c7 = arith.constant 7 : index
    %c0_165 = arith.constant 0 : index
    %439 = vector.load %arg3[%c7, %c0_165] : memref<8x32xf32, #tpu.memory_space<vmem>>, vector<1x32xf32>
    tpu.vector_store %arg3[%c7, %c0_165], %438 {strides = array<i32>} : memref<8x32xf32, #tpu.memory_space<vmem>>, vector<1x32xf32>,
    return
  }
  func.func @transform_0(%arg0: i32, %arg1: memref<64xi32, #tpu.memory_space<smem>>) -> (i32, i32) {
    %c0_i32 = arith.constant 0 : i32
    %c0_i32_0 = arith.constant 0 : i32
    %c0_i32_1 = arith.constant 0 : i32
    return %c0_i32, %c0_i32_0 : i32, i32
  }
  func.func @transform_1(%arg0: i32, %arg1: memref<64xi32, #tpu.memory_space<smem>>) -> (i32, i32) {
    %c0_i32 = arith.constant 0 : i32
    %c0_i32_0 = arith.constant 0 : i32
    return %arg0, %c0_i32 : i32, i32
  }
}

</mosaic_0001>

<llo_original>
// kernel: tpu_custom_call.1
$region0: #{tpu_custom_call.1}
  #allocation0 [shape = 'u32[]', space=smem, size = 0x4, offset = 0x4, fixed_abs, tag = 'smem constant byte address 0x4 - core index']
  #allocation1 [shape = 'u32[144,128]{1,0:T(1,128)}', space=vmem, size = 0x12000, scoped, tag = 'internal scratch']
  #allocation2 [shape = 's32[1]{0}', space=sflag, size = 0x4, scoped, tag = 'scoped memory for tpu_custom_call.1']
  #allocation3 [shape = 'u8[512]{0}', space=smem, size = 0x200, scoped, tag = 'prefetched SMEM operand 0']
  %s0 = inlined_call_operand.vmem [shape: s32[64], index: 0, kind: input, shape index: {}]
  %s1 = inlined_call_operand.vmem [shape: f32[64,32], index: 1, kind: input, shape index: {}]
  %s2 = inlined_call_operand.hbm [shape: f32[8,32], index: 2, kind: output, shape index: {}]
  %s3 = sld [smem:[#allocation0]]
  $region14: #{tpu_custom_call.1} parent=0
    _
  %s5 = ssub.s32 1, %s3
  %s6 = scalar_select 0, %s5, %s3
  %s7 = sshll.u32 %s0, 4
  %s8 = int_to_ptr.vmem [resolvable:$true] %s7
  %10 = dma.vmem_to_smem %s8, 16, [#allocation3], [#allocation2]
  %11 = dma.done [#allocation2], 16
  %12 = sfence
  $region1: #{tpu_custom_call.1} parent=0
    #allocation4 [shape = 'u8[4096]{0}', space=vmem, size = 0x1000, scoped, tag = 'output window, operand 0, single buffered']
    #allocation5 [shape = 's32[1]{0}', space=sflag, size = 0x4, scoped, tag = 'scoped memory for tpu_custom_call.1']
    %13 = vsyncpa [#allocation5], 0
    // Predicated region
    $region2: #{tpu_custom_call.1} parent=1 // pred_check
      _
    $region3: #{tpu_custom_call.1} parent=1 // pred_check_branch
      %15 = sbr.rel (0) target = $region5
    $region4: #{tpu_custom_call.1} parent=1 // pred_region
      _
    $region5: #{tpu_custom_call.1} parent=1 // pred_fallthru
      _
    %s16 = smul.u32 0, 64
    %s17 = sld [smem:[#allocation3 + %s16]]
    %s18 = scalar_lea.vmem %s1, %s17
    %v19 = vld [vmem:[%s18] sm:$0x1]
    %v20 = vadd.f32 %v19, 0.0
    %s21 = sadd.s32 %s16, 1
    %s22 = sld [smem:[#allocation3 + %s21]]
    %s23 = scalar_lea.vmem %s1, %s22
    %v24 = vld [vmem:[%s23] sm:$0x1]
    %v25 = vadd.f32 %v20, %v24
    %s26 = sadd.s32 %s16, 2
    %s27 = sld [smem:[#allocation3 + %s26]]
    %s28 = scalar_lea.vmem %s1, %s27
    %v29 = vld [vmem:[%s28] sm:$0x1]
    %v30 = vadd.f32 %v25, %v29
    %s31 = sadd.s32 %s16, 3
    %s32 = sld [smem:[#allocation3 + %s31]]
    %s33 = scalar_lea.vmem %s1, %s32
    %v34 = vld [vmem:[%s33] sm:$0x1]
    %v35 = vadd.f32 %v30, %v34
    %s36 = sadd.s32 %s16, 4
    %s37 = sld [smem:[#allocation3 + %s36]]
    %s38 = scalar_lea.vmem %s1, %s37
    %v39 = vld [vmem:[%s38] sm:$0x1]
    %v40 = vadd.f32 %v35, %v39
    %s41 = sadd.s32 %s16, 5
    %s42 = sld [smem:[#allocation3 + %s41]]
    %s43 = scalar_lea.vmem %s1, %s42
    %v44 = vld [vmem:[%s43] sm:$0x1]
    %v45 = vadd.f32 %v40, %v44
    %s46 = sadd.s32 %s16, 6
    %s47 = sld [smem:[#allocation3 + %s46]]
    %s48 = scalar_lea.vmem %s1, %s47
    %v49 = vld [vmem:[%s48] sm:$0x1]
    %v50 = vadd.f32 %v45, %v49
    %s51 = sadd.s32 %s16, 7
    %s52 = sld [smem:[#allocation3 + %s51]]
    %s53 = scalar_lea.vmem %s1, %s52
    %v54 = vld [vmem:[%s53] sm:$0x1]
    %v55 = vadd.f32 %v50, %v54
    %v56 = vmul.f32 %v55, 0.125
    %vm57 = vcmask 253952
    %58 = vst.msk [vmem:[#allocation4] sm:$0x1] %vm57, %v56
    %s59 = smul.u32 0, 8
    %s60 = sadd.s32 %s59, 1
    %s61 = smul.u32 %s60, 8
    %s62 = sld [smem:[#allocation3 + %s61]]
    %s63 = scalar_lea.vmem %s1, %s62
    %v64 = vld [vmem:[%s63] sm:$0x1]
    %v65 = vadd.f32 %v64, 0.0
    %s66 = sadd.s32 %s61, 1
    %s67 = sld [smem:[#allocation3 + %s66]]
    %s68 = scalar_lea.vmem %s1, %s67
    %v69 = vld [vmem:[%s68] sm:$0x1]
    %v70 = vadd.f32 %v65, %v69
    %s71 = sadd.s32 %s61, 2
    %s72 = sld [smem:[#allocation3 + %s71]]
    %s73 = scalar_lea.vmem %s1, %s72
    %v74 = vld [vmem:[%s73] sm:$0x1]
    %v75 = vadd.f32 %v70, %v74
    %s76 = sadd.s32 %s61, 3
    %s77 = sld [smem:[#allocation3 + %s76]]
    %s78 = scalar_lea.vmem %s1, %s77
    %v79 = vld [vmem:[%s78] sm:$0x1]
    %v80 = vadd.f32 %v75, %v79
    %s81 = sadd.s32 %s61, 4
    %s82 = sld [smem:[#allocation3 + %s81]]
    %s83 = scalar_lea.vmem %s1, %s82
    %v84 = vld [vmem:[%s83] sm:$0x1]
    %v85 = vadd.f32 %v80, %v84
    %s86 = sadd.s32 %s61, 5
    %s87 = sld [smem:[#allocation3 + %s86]]
    %s88 = scalar_lea.vmem %s1, %s87
    %v89 = vld [vmem:[%s88] sm:$0x1]
    %v90 = vadd.f32 %v85, %v89
    %s91 = sadd.s32 %s61, 6
    %s92 = sld [smem:[#allocation3 + %s91]]
    %s93 = scalar_lea.vmem %s1, %s92
    %v94 = vld [vmem:[%s93] sm:$0x1]
    %v95 = vadd.f32 %v90, %v94
    %s96 = sadd.s32 %s61, 7
    %s97 = sld [smem:[#allocation3 + %s96]]
    %s98 = scalar_lea.vmem %s1, %s97
    %v99 = vld [vmem:[%s98] sm:$0x1]
    %v100 = vadd.f32 %v95, %v99
    %v101 = vmul.f32 %v100, 0.125
    %102 = vst.msk [vmem:[#allocation4 + $0x1] sm:$0x1] %vm57, %v101
    %s103 = sadd.s32 %s59, 2
    %s104 = smul.u32 %s103, 8
    %s105 = sld [smem:[#allocation3 + %s104]]
    %s106 = scalar_lea.vmem %s1, %s105
    %v107 = vld [vmem:[%s106] sm:$0x1]
    %v108 = vadd.f32 %v107, 0.0
    %s109 = sadd.s32 %s104, 1
    %s110 = sld [smem:[#allocation3 + %s109]]
    %s111 = scalar_lea.vmem %s1, %s110
    %v112 = vld [vmem:[%s111] sm:$0x1]
    %v113 = vadd.f32 %v108, %v112
    %s114 = sadd.s32 %s104, 2
    %s115 = sld [smem:[#allocation3 + %s114]]
    %s116 = scalar_lea.vmem %s1, %s115
    %v117 = vld [vmem:[%s116] sm:$0x1]
    %v118 = vadd.f32 %v113, %v117
    %s119 = sadd.s32 %s104, 3
    %s120 = sld [smem:[#allocation3 + %s119]]
    %s121 = scalar_lea.vmem %s1, %s120
    %v122 = vld [vmem:[%s121] sm:$0x1]
    %v123 = vadd.f32 %v118, %v122
    %s124 = sadd.s32 %s104, 4
    %s125 = sld [smem:[#allocation3 + %s124]]
    %s126 = scalar_lea.vmem %s1, %s125
    %v127 = vld [vmem:[%s126] sm:$0x1]
    %v128 = vadd.f32 %v123, %v127
    %s129 = sadd.s32 %s104, 5
    %s130 = sld [smem:[#allocation3 + %s129]]
    %s131 = scalar_lea.vmem %s1, %s130
    %v132 = vld [vmem:[%s131] sm:$0x1]
    %v133 = vadd.f32 %v128, %v132
    %s134 = sadd.s32 %s104, 6
    %s135 = sld [smem:[#allocation3 + %s134]]
    %s136 = scalar_lea.vmem %s1, %s135
    %v137 = vld [vmem:[%s136] sm:$0x1]
    %v138 = vadd.f32 %v133, %v137
    %s139 = sadd.s32 %s104, 7
    %s140 = sld [smem:[#allocation3 + %s139]]
    %s141 = scalar_lea.vmem %s1, %s140
    %v142 = vld [vmem:[%s141] sm:$0x1]
    %v143 = vadd.f32 %v138, %v142
    %v144 = vmul.f32 %v143, 0.125
    %145 = vst.msk [vmem:[#allocation4 + $0x2] sm:$0x1] %vm57, %v144
    %s146 = sadd.s32 %s59, 3
    %s147 = smul.u32 %s146, 8
    %s148 = sld [smem:[#allocation3 + %s147]]
    %s149 = scalar_lea.vmem %s1, %s148
    %v150 = vld [vmem:[%s149] sm:$0x1]
    %v151 = vadd.f32 %v150, 0.0
    %s152 = sadd.s32 %s147, 1
    %s153 = sld [smem:[#allocation3 + %s152]]
    %s154 = scalar_lea.vmem %s1, %s153
    %v155 = vld [vmem:[%s154] sm:$0x1]
    %v156 = vadd.f32 %v151, %v155
    %s157 = sadd.s32 %s147, 2
    %s158 = sld [smem:[#allocation3 + %s157]]
    %s159 = scalar_lea.vmem %s1, %s158
    %v160 = vld [vmem:[%s159] sm:$0x1]
    %v161 = vadd.f32 %v156, %v160
    %s162 = sadd.s32 %s147, 3
    %s163 = sld [smem:[#allocation3 + %s162]]
    %s164 = scalar_lea.vmem %s1, %s163
    %v165 = vld [vmem:[%s164] sm:$0x1]
    %v166 = vadd.f32 %v161, %v165
    %s167 = sadd.s32 %s147, 4
    %s168 = sld [smem:[#allocation3 + %s167]]
    %s169 = scalar_lea.vmem %s1, %s168
    %v170 = vld [vmem:[%s169] sm:$0x1]
    %v171 = vadd.f32 %v166, %v170
    %s172 = sadd.s32 %s147, 5
    %s173 = sld [smem:[#allocation3 + %s172]]
    %s174 = scalar_lea.vmem %s1, %s173
    %v175 = vld [vmem:[%s174] sm:$0x1]
    %v176 = vadd.f32 %v171, %v175
    %s177 = sadd.s32 %s147, 6
    %s178 = sld [smem:[#allocation3 + %s177]]
    %s179 = scalar_lea.vmem %s1, %s178
    %v180 = vld [vmem:[%s179] sm:$0x1]
    %v181 = vadd.f32 %v176, %v180
    %s182 = sadd.s32 %s147, 7
    %s183 = sld [smem:[#allocation3 + %s182]]
    %s184 = scalar_lea.vmem %s1, %s183
    %v185 = vld [vmem:[%s184] sm:$0x1]
    %v186 = vadd.f32 %v181, %v185
    %v187 = vmul.f32 %v186, 0.125
    %188 = vst.msk [vmem:[#allocation4 + $0x3] sm:$0x1] %vm57, %v187
    %s189 = sadd.s32 %s59, 4
    %s190 = smul.u32 %s189, 8
    %s191 = sld [smem:[#allocation3 + %s190]]
    %s192 = scalar_lea.vmem %s1, %s191
    %v193 = vld [vmem:[%s192] sm:$0x1]
    %v194 = vadd.f32 %v193, 0.0
    %s195 = sadd.s32 %s190, 1
    %s196 = sld [smem:[#allocation3 + %s195]]
    %s197 = scalar_lea.vmem %s1, %s196
    %v198 = vld [vmem:[%s197] sm:$0x1]
    %v199 = vadd.f32 %v194, %v198
    %s200 = sadd.s32 %s190, 2
    %s201 = sld [smem:[#allocation3 + %s200]]
    %s202 = scalar_lea.vmem %s1, %s201
    %v203 = vld [vmem:[%s202] sm:$0x1]
    %v204 = vadd.f32 %v199, %v203
    %s205 = sadd.s32 %s190, 3
    %s206 = sld [smem:[#allocation3 + %s205]]
    %s207 = scalar_lea.vmem %s1, %s206
    %v208 = vld [vmem:[%s207] sm:$0x1]
    %v209 = vadd.f32 %v204, %v208
    %s210 = sadd.s32 %s190, 4
    %s211 = sld [smem:[#allocation3 + %s210]]
    %s212 = scalar_lea.vmem %s1, %s211
    %v213 = vld [vmem:[%s212] sm:$0x1]
    %v214 = vadd.f32 %v209, %v213
    %s215 = sadd.s32 %s190, 5
    %s216 = sld [smem:[#allocation3 + %s215]]
    %s217 = scalar_lea.vmem %s1, %s216
    %v218 = vld [vmem:[%s217] sm:$0x1]
    %v219 = vadd.f32 %v214, %v218
    %s220 = sadd.s32 %s190, 6
    %s221 = sld [smem:[#allocation3 + %s220]]
    %s222 = scalar_lea.vmem %s1, %s221
    %v223 = vld [vmem:[%s222] sm:$0x1]
    %v224 = vadd.f32 %v219, %v223
    %s225 = sadd.s32 %s190, 7
    %s226 = sld [smem:[#allocation3 + %s225]]
    %s227 = scalar_lea.vmem %s1, %s226
    %v228 = vld [vmem:[%s227] sm:$0x1]
    %v229 = vadd.f32 %v224, %v228
    %v230 = vmul.f32 %v229, 0.125
    %231 = vst.msk [vmem:[#allocation4 + $0x4] sm:$0x1] %vm57, %v230
    %s232 = sadd.s32 %s59, 5
    %s233 = smul.u32 %s232, 8
    %s234 = sld [smem:[#allocation3 + %s233]]
    %s235 = scalar_lea.vmem %s1, %s234
    %v236 = vld [vmem:[%s235] sm:$0x1]
    %v237 = vadd.f32 %v236, 0.0
    %s238 = sadd.s32 %s233, 1
    %s239 = sld [smem:[#allocation3 + %s238]]
    %s240 = scalar_lea.vmem %s1, %s239
    %v241 = vld [vmem:[%s240] sm:$0x1]
    %v242 = vadd.f32 %v237, %v241
    %s243 = sadd.s32 %s233, 2
    %s244 = sld [smem:[#allocation3 + %s243]]
    %s245 = scalar_lea.vmem %s1, %s244
    %v246 = vld [vmem:[%s245] sm:$0x1]
    %v247 = vadd.f32 %v242, %v246
    %s248 = sadd.s32 %s233, 3
    %s249 = sld [smem:[#allocation3 + %s248]]
    %s250 = scalar_lea.vmem %s1, %s249
    %v251 = vld [vmem:[%s250] sm:$0x1]
    %v252 = vadd.f32 %v247, %v251
    %s253 = sadd.s32 %s233, 4
    %s254 = sld [smem:[#allocation3 + %s253]]
    %s255 = scalar_lea.vmem %s1, %s254
    %v256 = vld [vmem:[%s255] sm:$0x1]
    %v257 = vadd.f32 %v252, %v256
    %s258 = sadd.s32 %s233, 5
    %s259 = sld [smem:[#allocation3 + %s258]]
    %s260 = scalar_lea.vmem %s1, %s259
    %v261 = vld [vmem:[%s260] sm:$0x1]
    %v262 = vadd.f32 %v257, %v261
    %s263 = sadd.s32 %s233, 6
    %s264 = sld [smem:[#allocation3 + %s263]]
    %s265 = scalar_lea.vmem %s1, %s264
    %v266 = vld [vmem:[%s265] sm:$0x1]
    %v267 = vadd.f32 %v262, %v266
    %s268 = sadd.s32 %s233, 7
    %s269 = sld [smem:[#allocation3 + %s268]]
    %s270 = scalar_lea.vmem %s1, %s269
    %v271 = vld [vmem:[%s270] sm:$0x1]
    %v272 = vadd.f32 %v267, %v271
    %v273 = vmul.f32 %v272, 0.125
    %274 = vst.msk [vmem:[#allocation4 + $0x5] sm:$0x1] %vm57, %v273
    %s275 = sadd.s32 %s59, 6
    %s276 = smul.u32 %s275, 8
    %s277 = sld [smem:[#allocation3 + %s276]]
    %s278 = scalar_lea.vmem %s1, %s277
    %v279 = vld [vmem:[%s278] sm:$0x1]
    %v280 = vadd.f32 %v279, 0.0
    %s281 = sadd.s32 %s276, 1
    %s282 = sld [smem:[#allocation3 + %s281]]
    %s283 = scalar_lea.vmem %s1, %s282
    %v284 = vld [vmem:[%s283] sm:$0x1]
    %v285 = vadd.f32 %v280, %v284
    %s286 = sadd.s32 %s276, 2
    %s287 = sld [smem:[#allocation3 + %s286]]
    %s288 = scalar_lea.vmem %s1, %s287
    %v289 = vld [vmem:[%s288] sm:$0x1]
    %v290 = vadd.f32 %v285, %v289
    %s291 = sadd.s32 %s276, 3
    %s292 = sld [smem:[#allocation3 + %s291]]
    %s293 = scalar_lea.vmem %s1, %s292
    %v294 = vld [vmem:[%s293] sm:$0x1]
    %v295 = vadd.f32 %v290, %v294
    %s296 = sadd.s32 %s276, 4
    %s297 = sld [smem:[#allocation3 + %s296]]
    %s298 = scalar_lea.vmem %s1, %s297
    %v299 = vld [vmem:[%s298] sm:$0x1]
    %v300 = vadd.f32 %v295, %v299
    %s301 = sadd.s32 %s276, 5
    %s302 = sld [smem:[#allocation3 + %s301]]
    %s303 = scalar_lea.vmem %s1, %s302
    %v304 = vld [vmem:[%s303] sm:$0x1]
    %v305 = vadd.f32 %v300, %v304
    %s306 = sadd.s32 %s276, 6
    %s307 = sld [smem:[#allocation3 + %s306]]
    %s308 = scalar_lea.vmem %s1, %s307
    %v309 = vld [vmem:[%s308] sm:$0x1]
    %v310 = vadd.f32 %v305, %v309
    %s311 = sadd.s32 %s276, 7
    %s312 = sld [smem:[#allocation3 + %s311]]
    %s313 = scalar_lea.vmem %s1, %s312
    %v314 = vld [vmem:[%s313] sm:$0x1]
    %v315 = vadd.f32 %v310, %v314
    %v316 = vmul.f32 %v315, 0.125
    %317 = vst.msk [vmem:[#allocation4 + $0x6] sm:$0x1] %vm57, %v316
    %s318 = sadd.s32 %s59, 7
    %s319 = smul.u32 %s318, 8
    %s320 = sld [smem:[#allocation3 + %s319]]
    %s321 = scalar_lea.vmem %s1, %s320
    %v322 = vld [vmem:[%s321] sm:$0x1]
    %v323 = vadd.f32 %v322, 0.0
    %s324 = sadd.s32 %s319, 1
    %s325 = sld [smem:[#allocation3 + %s324]]
    %s326 = scalar_lea.vmem %s1, %s325
    %v327 = vld [vmem:[%s326] sm:$0x1]
    %v328 = vadd.f32 %v323, %v327
    %s329 = sadd.s32 %s319, 2
    %s330 = sld [smem:[#allocation3 + %s329]]
    %s331 = scalar_lea.vmem %s1, %s330
    %v332 = vld [vmem:[%s331] sm:$0x1]
    %v333 = vadd.f32 %v328, %v332
    %s334 = sadd.s32 %s319, 3
    %s335 = sld [smem:[#allocation3 + %s334]]
    %s336 = scalar_lea.vmem %s1, %s335
    %v337 = vld [vmem:[%s336] sm:$0x1]
    %v338 = vadd.f32 %v333, %v337
    %s339 = sadd.s32 %s319, 4
    %s340 = sld [smem:[#allocation3 + %s339]]
    %s341 = scalar_lea.vmem %s1, %s340
    %v342 = vld [vmem:[%s341] sm:$0x1]
    %v343 = vadd.f32 %v338, %v342
    %s344 = sadd.s32 %s319, 5
    %s345 = sld [smem:[#allocation3 + %s344]]
    %s346 = scalar_lea.vmem %s1, %s345
    %v347 = vld [vmem:[%s346] sm:$0x1]
    %v348 = vadd.f32 %v343, %v347
    %s349 = sadd.s32 %s319, 6
    %s350 = sld [smem:[#allocation3 + %s349]]
    %s351 = scalar_lea.vmem %s1, %s350
    %v352 = vld [vmem:[%s351] sm:$0x1]
    %v353 = vadd.f32 %v348, %v352
    %s354 = sadd.s32 %s319, 7
    %s355 = sld [smem:[#allocation3 + %s354]]
    %s356 = scalar_lea.vmem %s1, %s355
    %v357 = vld [vmem:[%s356] sm:$0x1]
    %v358 = vadd.f32 %v353, %v357
    %v359 = vmul.f32 %v358, 0.125
    %360 = vst.msk [vmem:[#allocation4 + $0x7] sm:$0x1] %vm57, %v359
    // Predicated region
    $region6: #{tpu_custom_call.1} parent=1 // pred_check
      _
    $region7: #{tpu_custom_call.1} parent=1 // pred_check_branch
      %362 = sbr.rel (0) target = $region9
    $region8: #{tpu_custom_call.1} parent=1 // pred_region
      %s364 = ssub.s32 128, 128
      %365 = vsyncadd [#allocation5], %s364
      %s367 = sshll.u32 [#allocation4], 4
      %s368 = int_to_ptr.vmem [resolvable:$true] %s367
      %370 = dma.vmem_to_hbm [thread:$0]  %s368, 128, %s2, [#allocation5]
    $region9: #{tpu_custom_call.1} parent=1 // pred_fallthru
      _
    // Predicated region
    $region10: #{tpu_custom_call.1} parent=1 // pred_check
      _
    $region11: #{tpu_custom_call.1} parent=1 // pred_check_branch
      %372 = sbr.rel (0) target = $region13
    $region12: #{tpu_custom_call.1} parent=1 // pred_region
      %373 = dma.done [#allocation5], 128
    $region13: #{tpu_custom_call.1} parent=1 // pred_fallthru
      _
    %374 = vsyncpa [#allocation5], 1

</llo_original>
